<compile_context>
chip_gen: v6e
topology: v6e:2x2x1
jax: 0.10.0
libtpu: 0.0.40
codegen_flags: <defaults>
</compile_context>

<pallas_src>
import functools

import jax
import jax.numpy as jnp
from jax import lax
from jax.experimental import pallas as pl
from jax.experimental.pallas import tpu as pltpu

# ----- synthetic enc_dict configuration -----
NUM_SPARSE = 4          # number of sparse (categorical) features
NUM_DENSE = 3           # number of dense features
VOCAB = 128             # vocab size per sparse feature (lane-aligned)
BATCH = 200             # demo batch (padded to a multiple of the batch tile)
BATCH_TILE = 128        # rows per grid step (batch on the lane axis)
DNN_INPUT_DIM = NUM_SPARSE + NUM_DENSE


def lr_layer_kernel(ids_ref, dense_ref, tables_t_ref, w_ref, b_ref, out_ref):
    """One batch tile; layout is batch-on-lanes throughout.

    ids_ref      : [Fs, TB] int32 (VMEM)  categorical codes, batch on lanes
    dense_ref    : [Fd, TB] f32   (VMEM)
    tables_t_ref : [V, Fs]  f32   (VMEM, same block every grid step; V on sublanes)
    w_ref        : [Fs+Fd]  f32   (SMEM)  fc weight, concat order (sparse, dense)
    b_ref        : [1]      f32   (SMEM)  fc bias
    out_ref      : [1, TB]  f32   (VMEM)  lane-dense output slab
    """
    vocab, num_sparse = tables_t_ref.shape
    num_dense = dense_ref.shape[0]
    tb = out_ref.shape[1]

    # vocab iota on the sublane axis, shared by all features.
    iota_v = lax.broadcasted_iota(jnp.int32, (vocab, tb), 0)        # [V, TB]

    # Start from the bias, lane-dense.
    acc = jnp.full((1, tb), b_ref[0], dtype=jnp.float32)            # [1, TB]

    # Sparse half: per feature (Fs is a tiny compile-time constant), fold the fc
    # weight into the table column, then one-hot select + sublane reduce over V.
    #   acc[b] += sum_v (ids[f, b] == v) * tables[f, v] * w[f]
    for f in range(num_sparse):
        tab_col = tables_t_ref[:, f:f + 1] * w_ref[f]               # [V, 1]
        hit = ids_ref[f:f + 1, :] == iota_v                         # [V, TB]
        sel = jnp.where(hit, tab_col, 0.0)                          # [V, TB]
        acc = acc + jnp.sum(sel, axis=0, keepdims=True)             # [1, TB]

    # Dense half: scalar-weighted rows, all on lanes (no MXU).
    for k in range(num_dense):
        acc = acc + dense_ref[k:k + 1, :] * w_ref[num_sparse + k]   # [1, TB]

    out_ref[...] = acc.astype(out_ref.dtype)


@functools.partial(jax.jit, static_argnames=("batch_tile",))
def lr_layer_forward(ids, dense, tables, w, b, *, batch_tile=BATCH_TILE):
    """ids [B, Fs] int32, dense [B, Fd] f32, tables [Fs, V] f32,
    w [1, Fs+Fd] (nn.Linear weight), b [1] (nn.Linear bias)  ->  [B, 1] f32."""
    batch = ids.shape[0]
    num_sparse, vocab = tables.shape
    num_dense = dense.shape[1]

    b_pad = pl.cdiv(batch, batch_tile) * batch_tile
    # Host-side layout: feature on sublanes, batch on lanes.
    ids_t = jnp.transpose(ids)                         # [Fs, B]
    dense_t = jnp.transpose(dense)                     # [Fd, B]
    if b_pad != batch:
        ids_t = jnp.pad(ids_t, ((0, 0), (0, b_pad - batch)))       # pad id 0 is in-range
        dense_t = jnp.pad(dense_t, ((0, 0), (0, b_pad - batch)))
    tables_t = jnp.transpose(tables)                   # [V, Fs]: V on sublanes in-kernel
    w_flat = w.reshape(-1).astype(jnp.float32)         # [Fs+Fd] -> SMEM scalars
    b_flat = b.reshape(-1).astype(jnp.float32)         # [1]     -> SMEM scalar

    out = pl.pallas_call(
        lr_layer_kernel,
        out_shape=jax.ShapeDtypeStruct((1, b_pad), jnp.float32),
        grid=(b_pad // batch_tile,),
        in_specs=[
            pl.BlockSpec((num_sparse, batch_tile), lambda i: (0, i)),
            pl.BlockSpec((num_dense, batch_tile), lambda i: (0, i)),
            # Table block is constant across the grid -> stays VMEM-resident.
            # TODO(synk): for production CTR vocabs (1e5..1e7 rows) keep tables in HBM
            # (memory_space=pl.ANY) and row-gather with scalar-prefetched ids +
            # make_async_copy; the full-vocab one-hot only works for VMEM-resident tables.
            pl.BlockSpec((vocab, num_sparse), lambda i: (0, 0)),
            pl.BlockSpec(memory_space=pltpu.MemorySpace.SMEM),
            pl.BlockSpec(memory_space=pltpu.MemorySpace.SMEM),
        ],
        out_specs=pl.BlockSpec((1, batch_tile), lambda i: (0, i)),
        compiler_params=pltpu.CompilerParams(dimension_semantics=("parallel",)),
    )(ids_t, dense_t, tables_t, w_flat, b_flat)

    return out[0, :batch].reshape(batch, 1)


def lr_layer_reference(ids, dense, tables, w, b):
    # Pure-JAX reference of the PyTorch forward.
    feat_idx = jnp.arange(tables.shape[0])[None, :]               # [1, Fs]
    sparse_emb = tables[feat_idx, ids]                            # [B, Fs]
    dnn_input = jnp.concatenate([sparse_emb, dense], axis=1)      # [B, Fs+Fd]
    return dnn_input @ w.reshape(-1, 1) + b.reshape(1, 1)         # [B, 1]


if __name__ == "__main__":
    key = jax.random.PRNGKey(0)
    k_ids, k_dense, k_tab, k_w, k_b = jax.random.split(key, 5)

    # Example "data": categorical codes for sparse features + dense features.
    ids = jax.random.randint(k_ids, (BATCH, NUM_SPARSE), 0, VOCAB, dtype=jnp.int32)
    dense = jax.random.normal(k_dense, (BATCH, NUM_DENSE), dtype=jnp.float32)

    # Parameters: embedding tables (embedding_dim=1, squeezed) and nn.Linear(D, 1).
    tables = 0.1 * jax.random.normal(k_tab, (NUM_SPARSE, VOCAB), dtype=jnp.float32)
    w = 0.1 * jax.random.normal(k_w, (1, DNN_INPUT_DIM), dtype=jnp.float32)   # fc.weight
    b = jax.random.normal(k_b, (1,), dtype=jnp.float32)                       # fc.bias

    out = lr_layer_forward(ids, dense, tables, w, b)
    jax.block_until_ready(out)

    ref = lr_layer_reference(ids, dense, tables, w, b)
    assert out.shape == (BATCH, 1)
    assert jnp.allclose(out, ref, atol=1e-5, rtol=1e-5), (out, ref)

    print("KERNEL_OK")
</pallas_src>

<mosaic_0001>
module attributes {stable_mosaic.version = 11 : i64} {
  func.func @lr_layer_kernel(%arg0: i32, %arg1: memref<4x128xi32, #tpu.memory_space<vmem>>, %arg2: memref<3x128xf32, #tpu.memory_space<vmem>>, %arg3: memref<128x4xf32, #tpu.memory_space<vmem>>, %arg4: memref<7xf32, #tpu.memory_space<smem>>, %arg5: memref<1xf32, #tpu.memory_space<smem>>, %arg6: memref<1x128xf32, #tpu.memory_space<vmem>>) attributes {dimension_semantics = [#tpu.dimension_semantics<parallel>], iteration_bounds = array<i64: 2>, scalar_prefetch = 0 : i64, scratch_operands = 0 : i64, tpu.core_type = #tpu.core_type<tc>, window_params = [{transform_indices = @transform_0, window_bounds = array<i64: 4, 128>}, {transform_indices = @transform_1, window_bounds = array<i64: 3, 128>}, {pipeline_mode = #tpu.pipeline_mode<synchronous>, transform_indices = @transform_2, window_bounds = array<i64: 128, 4>}, {transform_indices = @transform_3, window_bounds = array<i64: 7>}, {transform_indices = @transform_4, window_bounds = array<i64: 1>}, {transform_indices = @transform_5, window_bounds = array<i64: 1, 128>}]} {
    %0 = tpu.iota {dimensions = array<i32: 0>} : vector<128x128xi32>
    %c0 = arith.constant 0 : index
    %1 = memref.load %arg5[%c0] : memref<1xf32, #tpu.memory_space<smem>>
    %2 = vector.broadcast %1 : f32 to vector<1x128xf32>
    %c0_0 = arith.constant 0 : index
    %c0_1 = arith.constant 0 : index
    %3 = vector.load %arg3[%c0_0, %c0_1] : memref<128x4xf32, #tpu.memory_space<vmem>>, vector<128x1xf32>
    %c0_2 = arith.constant 0 : index
    %4 = memref.load %arg4[%c0_2] : memref<7xf32, #tpu.memory_space<smem>>
    %5 = vector.broadcast %4 : f32 to vector<128x1xf32>
    %6 = arith.mulf %3, %5 : vector<128x1xf32>
    %c0_3 = arith.constant 0 : index
    %c0_4 = arith.constant 0 : index
    %7 = vector.load %arg1[%c0_3, %c0_4] : memref<4x128xi32, #tpu.memory_space<vmem>>, vector<1x128xi32>
    %8 = vector.broadcast %7 : vector<1x128xi32> to vector<128x128xi32>
    %9 = arith.cmpi eq, %8, %0 : vector<128x128xi32>
    %cst = arith.constant 0.000000e+00 : f32
    %10 = vector.shape_cast %6 : vector<128x1xf32> to vector<128x1xf32>
    %11 = vector.broadcast %10 : vector<128x1xf32> to vector<128x128xf32>
    %12 = vector.broadcast %cst : f32 to vector<128x128xf32>
    %13 = arith.select %9, %11, %12 : vector<128x128xi1>, vector<128x128xf32>
    %cst_5 = arith.constant dense<0.000000e+00> : vector<128xf32>
    %14 = vector.multi_reduction <add>, %13, %cst_5 [0] : vector<128x128xf32> to vector<128xf32>
    %15 = vector.shape_cast %14 : vector<128xf32> to vector<1x128xf32>
    %16 = arith.addf %2, %15 : vector<1x128xf32>
    %c0_6 = arith.constant 0 : index
    %c1 = arith.constant 1 : index
    %17 = vector.load %arg3[%c0_6, %c1] : memref<128x4xf32, #tpu.memory_space<vmem>>, vector<128x1xf32>
    %c1_7 = arith.constant 1 : index
    %18 = memref.load %arg4[%c1_7] : memref<7xf32, #tpu.memory_space<smem>>
    %19 = vector.broadcast %18 : f32 to vector<128x1xf32>
    %20 = arith.mulf %17, %19 : vector<128x1xf32>
    %c1_8 = arith.constant 1 : index
    %c0_9 = arith.constant 0 : index
    %21 = vector.load %arg1[%c1_8, %c0_9] : memref<4x128xi32, #tpu.memory_space<vmem>>, vector<1x128xi32>
    %22 = vector.broadcast %21 : vector<1x128xi32> to vector<128x128xi32>
    %23 = arith.cmpi eq, %22, %0 : vector<128x128xi32>
    %cst_10 = arith.constant 0.000000e+00 : f32
    %24 = vector.shape_cast %20 : vector<128x1xf32> to vector<128x1xf32>
    %25 = vector.broadcast %24 : vector<128x1xf32> to vector<128x128xf32>
    %26 = vector.broadcast %cst_10 : f32 to vector<128x128xf32>
    %27 = arith.select %23, %25, %26 : vector<128x128xi1>, vector<128x128xf32>
    %cst_11 = arith.constant dense<0.000000e+00> : vector<128xf32>
    %28 = vector.multi_reduction <add>, %27, %cst_11 [0] : vector<128x128xf32> to vector<128xf32>
    %29 = vector.shape_cast %28 : vector<128xf32> to vector<1x128xf32>
    %30 = arith.addf %16, %29 : vector<1x128xf32>
    %c0_12 = arith.constant 0 : index
    %c2 = arith.constant 2 : index
    %31 = vector.load %arg3[%c0_12, %c2] : memref<128x4xf32, #tpu.memory_space<vmem>>, vector<128x1xf32>
    %c2_13 = arith.constant 2 : index
    %32 = memref.load %arg4[%c2_13] : memref<7xf32, #tpu.memory_space<smem>>
    %33 = vector.broadcast %32 : f32 to vector<128x1xf32>
    %34 = arith.mulf %31, %33 : vector<128x1xf32>
    %c2_14 = arith.constant 2 : index
    %c0_15 = arith.constant 0 : index
    %35 = vector.load %arg1[%c2_14, %c0_15] : memref<4x128xi32, #tpu.memory_space<vmem>>, vector<1x128xi32>
    %36 = vector.broadcast %35 : vector<1x128xi32> to vector<128x128xi32>
    %37 = arith.cmpi eq, %36, %0 : vector<128x128xi32>
    %cst_16 = arith.constant 0.000000e+00 : f32
    %38 = vector.shape_cast %34 : vector<128x1xf32> to vector<128x1xf32>
    %39 = vector.broadcast %38 : vector<128x1xf32> to vector<128x128xf32>
    %40 = vector.broadcast %cst_16 : f32 to vector<128x128xf32>
    %41 = arith.select %37, %39, %40 : vector<128x128xi1>, vector<128x128xf32>
    %cst_17 = arith.constant dense<0.000000e+00> : vector<128xf32>
    %42 = vector.multi_reduction <add>, %41, %cst_17 [0] : vector<128x128xf32> to vector<128xf32>
    %43 = vector.shape_cast %42 : vector<128xf32> to vector<1x128xf32>
    %44 = arith.addf %30, %43 : vector<1x128xf32>
    %c0_18 = arith.constant 0 : index
    %c3 = arith.constant 3 : index
    %45 = vector.load %arg3[%c0_18, %c3] : memref<128x4xf32, #tpu.memory_space<vmem>>, vector<128x1xf32>
    %c3_19 = arith.constant 3 : index
    %46 = memref.load %arg4[%c3_19] : memref<7xf32, #tpu.memory_space<smem>>
    %47 = vector.broadcast %46 : f32 to vector<128x1xf32>
    %48 = arith.mulf %45, %47 : vector<128x1xf32>
    %c3_20 = arith.constant 3 : index
    %c0_21 = arith.constant 0 : index
    %49 = vector.load %arg1[%c3_20, %c0_21] : memref<4x128xi32, #tpu.memory_space<vmem>>, vector<1x128xi32>
    %50 = vector.broadcast %49 : vector<1x128xi32> to vector<128x128xi32>
    %51 = arith.cmpi eq, %50, %0 : vector<128x128xi32>
    %cst_22 = arith.constant 0.000000e+00 : f32
    %52 = vector.shape_cast %48 : vector<128x1xf32> to vector<128x1xf32>
    %53 = vector.broadcast %52 : vector<128x1xf32> to vector<128x128xf32>
    %54 = vector.broadcast %cst_22 : f32 to vector<128x128xf32>
    %55 = arith.select %51, %53, %54 : vector<128x128xi1>, vector<128x128xf32>
    %cst_23 = arith.constant dense<0.000000e+00> : vector<128xf32>
    %56 = vector.multi_reduction <add>, %55, %cst_23 [0] : vector<128x128xf32> to vector<128xf32>
    %57 = vector.shape_cast %56 : vector<128xf32> to vector<1x128xf32>
    %58 = arith.addf %44, %57 : vector<1x128xf32>
    %c0_24 = arith.constant 0 : index
    %c0_25 = arith.constant 0 : index
    %59 = vector.load %arg2[%c0_24, %c0_25] : memref<3x128xf32, #tpu.memory_space<vmem>>, vector<1x128xf32>
    %c4 = arith.constant 4 : index
    %60 = memref.load %arg4[%c4] : memref<7xf32, #tpu.memory_space<smem>>
    %61 = vector.broadcast %60 : f32 to vector<1x128xf32>
    %62 = arith.mulf %59, %61 : vector<1x128xf32>
    %63 = arith.addf %58, %62 : vector<1x128xf32>
    %c1_26 = arith.constant 1 : index
    %c0_27 = arith.constant 0 : index
    %64 = vector.load %arg2[%c1_26, %c0_27] : memref<3x128xf32, #tpu.memory_space<vmem>>, vector<1x128xf32>
    %c5 = arith.constant 5 : index
    %65 = memref.load %arg4[%c5] : memref<7xf32, #tpu.memory_space<smem>>
    %66 = vector.broadcast %65 : f32 to vector<1x128xf32>
    %67 = arith.mulf %64, %66 : vector<1x128xf32>
    %68 = arith.addf %63, %67 : vector<1x128xf32>
    %c2_28 = arith.constant 2 : index
    %c0_29 = arith.constant 0 : index
    %69 = vector.load %arg2[%c2_28, %c0_29] : memref<3x128xf32, #tpu.memory_space<vmem>>, vector<1x128xf32>
    %c6 = arith.constant 6 : index
    %70 = memref.load %arg4[%c6] : memref<7xf32, #tpu.memory_space<smem>>
    %71 = vector.broadcast %70 : f32 to vector<1x128xf32>
    %72 = arith.mulf %69, %71 : vector<1x128xf32>
    %73 = arith.addf %68, %72 : vector<1x128xf32>
    %c0_30 = arith.constant 0 : index
    %c0_31 = arith.constant 0 : index
    %74 = vector.load %arg6[%c0_30, %c0_31] : memref<1x128xf32, #tpu.memory_space<vmem>>, vector<1x128xf32>
    tpu.vector_store %arg6[%c0_30, %c0_31], %73 {strides = array<i32>} : memref<1x128xf32, #tpu.memory_space<vmem>>, vector<1x128xf32>,
    return
  }
  func.func @transform_0(%arg0: i32) -> (i32, i32) {
    %c0_i32 = arith.constant 0 : i32
    %c0_i32_0 = arith.constant 0 : i32
    return %c0_i32, %arg0 : i32, i32
  }
  func.func @transform_1(%arg0: i32) -> (i32, i32) {
    %c0_i32 = arith.constant 0 : i32
    %c0_i32_0 = arith.constant 0 : i32
    return %c0_i32, %arg0 : i32, i32
  }
  func.func @transform_2(%arg0: i32) -> (i32, i32) {
    %c0_i32 = arith.constant 0 : i32
    %c0_i32_0 = arith.constant 0 : i32
    %c0_i32_1 = arith.constant 0 : i32
    return %c0_i32, %c0_i32_0 : i32, i32
  }
  func.func @transform_3(%arg0: i32) -> i32 {
    %c0_i32 = arith.constant 0 : i32
    %c0_i32_0 = arith.constant 0 : i32
    return %c0_i32 : i32
  }
  func.func @transform_4(%arg0: i32) -> i32 {
    %c0_i32 = arith.constant 0 : i32
    %c0_i32_0 = arith.constant 0 : i32
    return %c0_i32 : i32
  }
  func.func @transform_5(%arg0: i32) -> (i32, i32) {
    %c0_i32 = arith.constant 0 : i32
    %c0_i32_0 = arith.constant 0 : i32
    return %c0_i32, %arg0 : i32, i32
  }
}

</mosaic_0001>

<llo_original>
// kernel: lr_layer_forward.1
$region0: #{lr_layer_forward.1}
  #allocation0 [shape = 'u32[]', space=smem, size = 0x4, offset = 0x4, fixed_abs, tag = 'smem constant byte address 0x4 - core index']
  #allocation1 [shape = 'u32[144,128]{1,0:T(1,128)}', space=vmem, size = 0x12000, scoped, tag = 'internal scratch']
  #allocation2 [shape = 'f32[1]{0:T(128)S(6)}', space=smem, size = 0x200, scoped, tag = 'scoped memory for lr_layer_forward.1']
  %s0 = inlined_call_operand.vmem [shape: s32[4,256], index: 0, kind: input, shape index: {}]
  %s1 = inlined_call_operand.vmem [shape: f32[3,256], index: 1, kind: input, shape index: {}]
  %s2 = inlined_call_operand.vmem [shape: f32[128,4], index: 2, kind: input, shape index: {}]
  %s3 = inlined_call_operand.vmem [shape: f32[7], index: 3, kind: input, shape index: {}]
  %s4 = inlined_call_operand.<no memory space> [shape: f32[1], index: 4, kind: input, shape index: {}]
  %s5 = inlined_call_operand.vmem [shape: f32[1,256], index: 5, kind: output, shape index: {}]
  %s6 = sld [smem:[#allocation0]]
  $region57: #{lr_layer_forward.1} parent=0
    _
  %s8 = ssub.s32 1, %s6
  %s9 = scalar_select 0, %s8, %s6
  %10 = sst [smem:[#allocation2]] %s4
  $region1: #{lr_layer_forward.1} parent=0
    #allocation3 [shape = 'u8[512]{0}', space=smem, size = 0x200, scoped, tag = 'input window, operand 3, single buffered']
    #allocation4 [shape = 's32[2]{0}', space=sflag, size = 0x8, scoped, tag = 'scoped memory for lr_layer_forward.1']
    %11 = vsyncpa [#allocation4], 0
    loop: start=0, step=1, limit=4
    $region2: #{lr_layer_forward.1} parent=1 // loop_pre_header
      _
    $region3: #{lr_layer_forward.1} parent=1 // loop_header
      %s13 = sphi 0, %s17
      %p14 = scmp.ge.s32.totalorder %s13, 4
      %s23 = sphi 0, %s25
      %s26 = sphi 0, %s23
      %s27 = sphi 0, %s26
      %s43 = sphi 0, %s27
      %s49 = sphi 0, %s51
      %s52 = sphi 0, %s49
      %s53 = sphi 0, %s52
      %s69 = sphi 0, %s53
      %s73 = sphi 0, %s73
      %s75 = sphi 0, %s73
      %s76 = sphi 0, %s75
      %s90 = sphi 0, %s76
      %s94 = sphi 0, %s94
      %s96 = sphi 0, %s94
      %s97 = sphi 0, %s96
      %s111 = sphi 0, %s97
      %s115 = sphi 0, %s115
      %s117 = sphi 0, %s115
      %s118 = sphi 0, %s117
      %s132 = sphi 0, %s118
      %s138 = sphi 0, %s140
      %s141 = sphi 0, %s138
      %s142 = sphi 0, %s141
      %s158 = sphi 0, %s142
    $region4: #{lr_layer_forward.1} parent=1 // loop_header_branch
      %16 = sbr.rel (%p14) target = $region8
    $region5: #{lr_layer_forward.1} parent=1 // loop_body
      %s18 = ssub.s32 %s13, 1
      %s19 = ssub.s32 %s13, 2
      %s20 = sadd.s32 %s13, 1
      %s21 = ssub.s32 %s13, %s20
      %p22 = scmp.eq.s32.totalorder %s21, 0
      %s24 = sadd.s32 %s23, 1
      %s25 = scalar_select %p22, %s23, %s24
      %p28 = pneg %p22
      %p29 = scmp.eq.s32.totalorder %s13, 1
      %p30 = por %p28, %p29
      %p31 = scmp.ne.s32.totalorder %s23, %s26
      %p32 = scmp.eq.s32.totalorder %s13, 0
      %p33 = por %p31, %p32
      %p34 = scmp.ne.s32.totalorder %s23, %s26
      %p35 = scmp.eq.s32.totalorder %s18, 1
      %p36 = por %p34, %p35
      %p37 = scmp.ne.s32.totalorder %s26, %s27
      %p38 = scmp.eq.s32.totalorder %s18, 0
      %p39 = por %p37, %p38
      %p40 = scmp.ne.s32.totalorder %s26, %s27
      %p41 = scmp.eq.s32.totalorder %s19, 1
      %p42 = por %p40, %p41
      %p44 = scmp.ne.s32.totalorder %s27, %s43
      %p45 = scmp.eq.s32.totalorder %s19, 0
      %p46 = por %p44, %p45
      %s47 = ssub.s32 %s13, %s20
      %p48 = scmp.eq.s32.totalorder %s47, 0
      %s50 = sadd.s32 %s49, 1
      %s51 = scalar_select %p48, %s49, %s50
      %p54 = pneg %p48
      %p55 = scmp.eq.s32.totalorder %s13, 1
      %p56 = por %p54, %p55
      %p57 = scmp.ne.s32.totalorder %s49, %s52
      %p58 = scmp.eq.s32.totalorder %s13, 0
      %p59 = por %p57, %p58
      %p60 = scmp.ne.s32.totalorder %s49, %s52
      %p61 = scmp.eq.s32.totalorder %s18, 1
      %p62 = por %p60, %p61
      %p63 = scmp.ne.s32.totalorder %s52, %s53
      %p64 = scmp.eq.s32.totalorder %s18, 0
      %p65 = por %p63, %p64
      %p66 = scmp.ne.s32.totalorder %s52, %s53
      %p67 = scmp.eq.s32.totalorder %s19, 1
      %p68 = por %p66, %p67
      %p70 = scmp.ne.s32.totalorder %s53, %s69
      %p71 = scmp.eq.s32.totalorder %s19, 0
      %p72 = por %p70, %p71
      %s74 = sadd.s32 %s73, 1
      %p77 = scmp.eq.s32.totalorder %s13, 1
      %p78 = scmp.ne.s32.totalorder %s73, %s75
      %p79 = scmp.eq.s32.totalorder %s13, 0
      %p80 = por %p78, %p79
      %p81 = scmp.ne.s32.totalorder %s73, %s75
      %p82 = scmp.eq.s32.totalorder %s18, 1
      %p83 = por %p81, %p82
      %p84 = scmp.ne.s32.totalorder %s75, %s76
      %p85 = scmp.eq.s32.totalorder %s18, 0
      %p86 = por %p84, %p85
      %p87 = scmp.ne.s32.totalorder %s75, %s76
      %p88 = scmp.eq.s32.totalorder %s19, 1
      %p89 = por %p87, %p88
      %p91 = scmp.ne.s32.totalorder %s76, %s90
      %p92 = scmp.eq.s32.totalorder %s19, 0
      %p93 = por %p91, %p92
      %s95 = sadd.s32 %s94, 1
      %p98 = scmp.eq.s32.totalorder %s13, 1
      %p99 = scmp.ne.s32.totalorder %s94, %s96
      %p100 = scmp.eq.s32.totalorder %s13, 0
      %p101 = por %p99, %p100
      %p102 = scmp.ne.s32.totalorder %s94, %s96
      %p103 = scmp.eq.s32.totalorder %s18, 1
      %p104 = por %p102, %p103
      %p105 = scmp.ne.s32.totalorder %s96, %s97
      %p106 = scmp.eq.s32.totalorder %s18, 0
      %p107 = por %p105, %p106
      %p108 = scmp.ne.s32.totalorder %s96, %s97
      %p109 = scmp.eq.s32.totalorder %s19, 1
      %p110 = por %p108, %p109
      %p112 = scmp.ne.s32.totalorder %s97, %s111
      %p113 = scmp.eq.s32.totalorder %s19, 0
      %p114 = por %p112, %p113
      %s116 = sadd.s32 %s115, 1
      %p119 = scmp.eq.s32.totalorder %s13, 1
      %p120 = scmp.ne.s32.totalorder %s115, %s117
      %p121 = scmp.eq.s32.totalorder %s13, 0
      %p122 = por %p120, %p121
      %p123 = scmp.ne.s32.totalorder %s115, %s117
      %p124 = scmp.eq.s32.totalorder %s18, 1
      %p125 = por %p123, %p124
      %p126 = scmp.ne.s32.totalorder %s117, %s118
      %p127 = scmp.eq.s32.totalorder %s18, 0
      %p128 = por %p126, %p127
      %p129 = scmp.ne.s32.totalorder %s117, %s118
      %p130 = scmp.eq.s32.totalorder %s19, 1
      %p131 = por %p129, %p130
      %p133 = scmp.ne.s32.totalorder %s118, %s132
      %p134 = scmp.eq.s32.totalorder %s19, 0
      %p135 = por %p133, %p134
      %s136 = ssub.s32 %s13, %s20
      %p137 = scmp.eq.s32.totalorder %s136, 0
      %s139 = sadd.s32 %s138, 1
      %s140 = scalar_select %p137, %s138, %s139
      %p143 = pneg %p137
      %p144 = scmp.eq.s32.totalorder %s13, 1
      %p145 = por %p143, %p144
      %p146 = scmp.ne.s32.totalorder %s138, %s141
      %p147 = scmp.eq.s32.totalorder %s13, 0
      %p148 = por %p146, %p147
      %p149 = scmp.ne.s32.totalorder %s138, %s141
      %p150 = scmp.eq.s32.totalorder %s18, 1
      %p151 = por %p149, %p150
      %p152 = scmp.ne.s32.totalorder %s141, %s142
      %p153 = scmp.eq.s32.totalorder %s18, 0
      %p154 = por %p152, %p153
      %p155 = scmp.ne.s32.totalorder %s141, %s142
      %p156 = scmp.eq.s32.totalorder %s19, 1
      %p157 = por %p155, %p156
      %p159 = scmp.ne.s32.totalorder %s142, %s158
      %p160 = scmp.eq.s32.totalorder %s19, 0
      %p161 = por %p159, %p160
      %p162 = scmp.le.s32.totalorder 1, %s13
      %p163 = scmp.lt.s32.totalorder %s13, 3
      %p164 = pnand %p162, %p163
      %p165 = pneg %p164
      // Predicated region
      $region9: #{lr_layer_forward.1} parent=5 // pred_check
        _
      $region10: #{lr_layer_forward.1} parent=5 // pred_check_branch
        %167 = sbr.rel (%p164) target = $region12
      $region11: #{lr_layer_forward.1} parent=5 // pred_region
        %s168 = ssub.s32 %s13, 1
        // Predicated region
        $region13: #{lr_layer_forward.1} parent=11 // pred_check
          %p169 = pneg %p86
        $region14: #{lr_layer_forward.1} parent=11 // pred_check_branch
          %171 = sbr.rel (%p169) target = $region16
        $region15: #{lr_layer_forward.1} parent=11 // pred_region
          _
        $region16: #{lr_layer_forward.1} parent=11 // pred_fallthru
          _
        // Predicated region
        $region17: #{lr_layer_forward.1} parent=11 // pred_check
          %p172 = pneg %p107
        $region18: #{lr_layer_forward.1} parent=11 // pred_check_branch
          %174 = sbr.rel (%p172) target = $region20
        $region19: #{lr_layer_forward.1} parent=11 // pred_region
          %s176 = ssub.s32 16, 16
          %177 = vsyncadd [#allocation4], %s176
          %s179 = sshll.u32 %s3, 4
          %s180 = int_to_ptr.vmem [resolvable:$true] %s179
          %182 = dma.vmem_to_smem %s180, 16, [#allocation3], [#allocation4]
        $region20: #{lr_layer_forward.1} parent=11 // pred_fallthru
          _
        // Predicated region
        $region21: #{lr_layer_forward.1} parent=11 // pred_check
          %p183 = pneg %p128
        $region22: #{lr_layer_forward.1} parent=11 // pred_check_branch
          %185 = sbr.rel (%p183) target = $region24
        $region23: #{lr_layer_forward.1} parent=11 // pred_region
          _
        $region24: #{lr_layer_forward.1} parent=11 // pred_fallthru
          _
      $region12: #{lr_layer_forward.1} parent=5 // pred_fallthru
        _
      %p186 = scmp.lt.s32.totalorder %s13, 2
      // Predicated region
      $region25: #{lr_layer_forward.1} parent=5 // pred_check
        %p187 = pneg %p186
      $region26: #{lr_layer_forward.1} parent=5 // pred_check_branch
        %189 = sbr.rel (%p187) target = $region28
      $region27: #{lr_layer_forward.1} parent=5 // pred_region
        // Predicated region
        $region29: #{lr_layer_forward.1} parent=27 // pred_check
          %p190 = pneg %p33
        $region30: #{lr_layer_forward.1} parent=27 // pred_check_branch
          %192 = sbr.rel (%p190) target = $region32
        $region31: #{lr_layer_forward.1} parent=27 // pred_region
          %p193 = scmp.lt.s32.totalorder %s13, 1
          %s194 = scalar_select %p193, %s13, 1
          %s195 = smul.addr %s194, 4
          %s196 = scalar_lea.vmem %s0, %s195
        $region32: #{lr_layer_forward.1} parent=27 // pred_fallthru
          _
        // Predicated region
        $region33: #{lr_layer_forward.1} parent=27 // pred_check
          %p197 = pneg %p59
        $region34: #{lr_layer_forward.1} parent=27 // pred_check_branch
          %199 = sbr.rel (%p197) target = $region36
        $region35: #{lr_layer_forward.1} parent=27 // pred_region
          %p200 = scmp.lt.s32.totalorder %s13, 1
          %s201 = scalar_select %p200, %s13, 1
          %s202 = smul.addr %s201, 4
          %s203 = scalar_lea.vmem %s1, %s202
        $region36: #{lr_layer_forward.1} parent=27 // pred_fallthru
          _
      $region28: #{lr_layer_forward.1} parent=5 // pred_fallthru
        _
      %p204 = scmp.le.s32.totalorder 1, %s13
      %p205 = scmp.lt.s32.totalorder %s13, 3
      %p206 = pnand %p204, %p205
      %p207 = pneg %p206
      // Predicated region
      $region37: #{lr_layer_forward.1} parent=5 // pred_check
        _
      $region38: #{lr_layer_forward.1} parent=5 // pred_check_branch
        %209 = sbr.rel (%p206) target = $region40
      $region39: #{lr_layer_forward.1} parent=5 // pred_region
        %s210 = ssub.s32 %s13, 1
        // Predicated region
        $region41: #{lr_layer_forward.1} parent=39 // pred_check
          %p211 = pneg %p107
        $region42: #{lr_layer_forward.1} parent=39 // pred_check_branch
          %213 = sbr.rel (%p211) target = $region44
        $region43: #{lr_layer_forward.1} parent=39 // pred_region
          %214 = dma.done [#allocation4], 16
        $region44: #{lr_layer_forward.1} parent=39 // pred_fallthru
          _
        %215 = sfence
        %p216 = scmp.lt.s32.totalorder %s18, 1
        %s217 = scalar_select %p216, %s18, 1
        %s218 = smul.addr %s217, 4
        %s219 = scalar_lea.vmem %s0, %s218
        %p220 = pneg %p39
        %p221 = pneg %p36
        %p222 = scmp.lt.s32.totalorder %s18, 1
        %s223 = scalar_select %p222, %s18, 1
        %s224 = smul.addr %s223, 4
        %s225 = scalar_lea.vmem %s1, %s224
        %p226 = pneg %p65
        %p227 = pneg %p62
        %p228 = pneg %p86
        %p229 = pneg %p83
        %p230 = pneg %p107
        %p231 = pneg %p104
        %p232 = pneg %p128
        %p233 = pneg %p125
        %p234 = pneg %p154
        %p235 = pneg %p151
        %p236 = scmp.lt.s32.totalorder %s18, 1
        %s237 = scalar_select %p236, %s18, 1
        %s238 = scalar_lea.vmem %s5, %s237
        %p239 = scmp.lt.s32.totalorder %s18, 1
        %s240 = scalar_select %p239, %s18, 1
        %s241 = smul.addr %s240, 4
        %s242 = scalar_lea.vmem %s0, %s241
        %p243 = scmp.lt.s32.totalorder %s18, 1
        %s244 = scalar_select %p243, %s18, 1
        %s245 = smul.addr %s244, 4
        %s246 = scalar_lea.vmem %s1, %s245
        %p247 = scmp.lt.s32.totalorder %s18, 1
        %s248 = scalar_select %p247, %s18, 1
        %s249 = scalar_lea.vmem %s5, %s248
        %v250 = vlaneseq
        %v251 = vshrl.u32 %v250, 7
        %v252 = vadd.s32 %v251, 8
        %v253 = vadd.s32 %v251, 16
        %v254 = vadd.s32 %v251, 24
        %v255 = vadd.s32 %v251, 32
        %v256 = vadd.s32 %v251, 40
        %v257 = vadd.s32 %v251, 48
        %v258 = vadd.s32 %v251, 56
        %v259 = vadd.s32 %v251, 64
        %v260 = vadd.s32 %v251, 72
        %v261 = vadd.s32 %v251, 80
        %v262 = vadd.s32 %v251, 88
        %v263 = vadd.s32 %v251, 96
        %v264 = vadd.s32 %v251, 104
        %v265 = vadd.s32 %v251, 112
        %v266 = vadd.s32 %v251, 120
        %s267 = sld [smem:[#allocation2]]
        %v268 = vstv %s267
        %v269 = vld [vmem:[%s2] sm:$0xff]
        %v270 = vld [vmem:[%s2 + $0x8] sm:$0xff]
        %v271 = vld [vmem:[%s2 + $0x10] sm:$0xff]
        %v272 = vld [vmem:[%s2 + $0x18] sm:$0xff]
        %v273 = vld [vmem:[%s2 + $0x20] sm:$0xff]
        %v274 = vld [vmem:[%s2 + $0x28] sm:$0xff]
        %v275 = vld [vmem:[%s2 + $0x30] sm:$0xff]
        %v276 = vld [vmem:[%s2 + $0x38] sm:$0xff]
        %v277 = vld [vmem:[%s2 + $0x40] sm:$0xff]
        %v278 = vld [vmem:[%s2 + $0x48] sm:$0xff]
        %v279 = vld [vmem:[%s2 + $0x50] sm:$0xff]
        %v280 = vld [vmem:[%s2 + $0x58] sm:$0xff]
        %v281 = vld [vmem:[%s2 + $0x60] sm:$0xff]
        %v282 = vld [vmem:[%s2 + $0x68] sm:$0xff]
        %v283 = vld [vmem:[%s2 + $0x70] sm:$0xff]
        %v284 = vld [vmem:[%s2 + $0x78] sm:$0xff]
        %s285 = sld [smem:[#allocation3]]
        %v286 = vstv %s285
        %v287 = vmul.f32 %v269, %v286
        %v288 = vmul.f32 %v270, %v286
        %v289 = vmul.f32 %v271, %v286
        %v290 = vmul.f32 %v272, %v286
        %v291 = vmul.f32 %v273, %v286
        %v292 = vmul.f32 %v274, %v286
        %v293 = vmul.f32 %v275, %v286
        %v294 = vmul.f32 %v276, %v286
        %v295 = vmul.f32 %v277, %v286
        %v296 = vmul.f32 %v278, %v286
        %v297 = vmul.f32 %v279, %v286
        %v298 = vmul.f32 %v280, %v286
        %v299 = vmul.f32 %v281, %v286
        %v300 = vmul.f32 %v282, %v286
        %v301 = vmul.f32 %v283, %v286
        %v302 = vmul.f32 %v284, %v286
        %v303 = vld [vmem:[%s242] sm:$0x1]
        %v304 = vlaneseq
        %v305 = vshrl.u32 %v304, 7
        %v306 = vsub.s32 0, %v305
        %v307 = vrot.slane %v303, %v306
        %vm308 = vcmp.eq.s32.totalorder %v307, %v251
        %vm309 = vcmp.eq.s32.totalorder %v307, %v252
        %vm310 = vcmp.eq.s32.totalorder %v307, %v253
        %vm311 = vcmp.eq.s32.totalorder %v307, %v254
        %vm312 = vcmp.eq.s32.totalorder %v307, %v255
        %vm313 = vcmp.eq.s32.totalorder %v307, %v256
        %vm314 = vcmp.eq.s32.totalorder %v307, %v257
        %vm315 = vcmp.eq.s32.totalorder %v307, %v258
        %vm316 = vcmp.eq.s32.totalorder %v307, %v259
        %vm317 = vcmp.eq.s32.totalorder %v307, %v260
        %vm318 = vcmp.eq.s32.totalorder %v307, %v261
        %vm319 = vcmp.eq.s32.totalorder %v307, %v262
        %vm320 = vcmp.eq.s32.totalorder %v307, %v263
        %vm321 = vcmp.eq.s32.totalorder %v307, %v264
        %vm322 = vcmp.eq.s32.totalorder %v307, %v265
        %vm323 = vcmp.eq.s32.totalorder %v307, %v266
        %325 = vset.pattern.permute.xlu0 0
        %326 = vperm.xlu0 %325, %v287
        %v327 = vpop.permute.xlu0 %326
        %330 = vset.pattern.permute.xlu0 0
        %331 = vperm.xlu0 %330, %v288
        %v332 = vpop.permute.xlu0 %331
        %335 = vset.pattern.permute.xlu0 0
        %336 = vperm.xlu0 %335, %v289
        %v337 = vpop.permute.xlu0 %336
        %340 = vset.pattern.permute.xlu0 0
        %341 = vperm.xlu0 %340, %v290
        %v342 = vpop.permute.xlu0 %341
        %345 = vset.pattern.permute.xlu0 0
        %346 = vperm.xlu0 %345, %v291
        %v347 = vpop.permute.xlu0 %346
        %350 = vset.pattern.permute.xlu0 0
        %351 = vperm.xlu0 %350, %v292
        %v352 = vpop.permute.xlu0 %351
        %355 = vset.pattern.permute.xlu0 0
        %356 = vperm.xlu0 %355, %v293
        %v357 = vpop.permute.xlu0 %356
        %360 = vset.pattern.permute.xlu0 0
        %361 = vperm.xlu0 %360, %v294
        %v362 = vpop.permute.xlu0 %361
        %365 = vset.pattern.permute.xlu0 0
        %366 = vperm.xlu0 %365, %v295
        %v367 = vpop.permute.xlu0 %366
        %370 = vset.pattern.permute.xlu0 0
        %371 = vperm.xlu0 %370, %v296
        %v372 = vpop.permute.xlu0 %371
        %375 = vset.pattern.permute.xlu0 0
        %376 = vperm.xlu0 %375, %v297
        %v377 = vpop.permute.xlu0 %376
        %380 = vset.pattern.permute.xlu0 0
        %381 = vperm.xlu0 %380, %v298
        %v382 = vpop.permute.xlu0 %381
        %385 = vset.pattern.permute.xlu0 0
        %386 = vperm.xlu0 %385, %v299
        %v387 = vpop.permute.xlu0 %386
        %390 = vset.pattern.permute.xlu0 0
        %391 = vperm.xlu0 %390, %v300
        %v392 = vpop.permute.xlu0 %391
        %395 = vset.pattern.permute.xlu0 0
        %396 = vperm.xlu0 %395, %v301
        %v397 = vpop.permute.xlu0 %396
        %400 = vset.pattern.permute.xlu0 0
        %401 = vperm.xlu0 %400, %v302
        %v402 = vpop.permute.xlu0 %401
        %v404 = vsel %vm308, %v327, 0.0
        %v405 = vsel %vm309, %v332, 0.0
        %v406 = vsel %vm310, %v337, 0.0
        %v407 = vsel %vm311, %v342, 0.0
        %v408 = vsel %vm312, %v347, 0.0
        %v409 = vsel %vm313, %v352, 0.0
        %v410 = vsel %vm314, %v357, 0.0
        %v411 = vsel %vm315, %v362, 0.0
        %v412 = vsel %vm316, %v367, 0.0
        %v413 = vsel %vm317, %v372, 0.0
        %v414 = vsel %vm318, %v377, 0.0
        %v415 = vsel %vm319, %v382, 0.0
        %v416 = vsel %vm320, %v387, 0.0
        %v417 = vsel %vm321, %v392, 0.0
        %v418 = vsel %vm322, %v397, 0.0
        %v419 = vsel %vm323, %v402, 0.0
        %v420 = vadd.f32 %v404, %v405
        %v421 = vadd.f32 %v420, %v406
        %v422 = vadd.f32 %v421, %v407
        %v423 = vadd.f32 %v422, %v408
        %v424 = vadd.f32 %v423, %v409
        %v425 = vadd.f32 %v424, %v410
        %v426 = vadd.f32 %v425, %v411
        %v427 = vadd.f32 %v426, %v412
        %v428 = vadd.f32 %v427, %v413
        %v429 = vadd.f32 %v428, %v414
        %v430 = vadd.f32 %v429, %v415
        %v431 = vadd.f32 %v430, %v416
        %v432 = vadd.f32 %v431, %v417
        %v433 = vadd.f32 %v432, %v418
        %v434 = vadd.f32 %v433, %v419
        %v435 = vrot.slane %v434, 4
        %v436 = vadd.f32 %v434, %v435
        %v437 = vrot.slane %v436, 2
        %v438 = vadd.f32 %v436, %v437
        %v439 = vrot.slane %v438, 1
        %v440 = vadd.f32 %v438, %v439
        %v441 = vadd.f32 %v268, %v440
        %s442 = sld [smem:[#allocation3 + $0x1]]
        %v443 = vstv %s442
        %v444 = vmul.f32 %v269, %v443
        %v445 = vmul.f32 %v270, %v443
        %v446 = vmul.f32 %v271, %v443
        %v447 = vmul.f32 %v272, %v443
        %v448 = vmul.f32 %v273, %v443
        %v449 = vmul.f32 %v274, %v443
        %v450 = vmul.f32 %v275, %v443
        %v451 = vmul.f32 %v276, %v443
        %v452 = vmul.f32 %v277, %v443
        %v453 = vmul.f32 %v278, %v443
        %v454 = vmul.f32 %v279, %v443
        %v455 = vmul.f32 %v280, %v443
        %v456 = vmul.f32 %v281, %v443
        %v457 = vmul.f32 %v282, %v443
        %v458 = vmul.f32 %v283, %v443
        %v459 = vmul.f32 %v284, %v443
        %v460 = vld [vmem:[%s242 + $0x1] sm:$0x1]
        %v461 = vlaneseq
        %v462 = vshrl.u32 %v461, 7
        %v463 = vsub.s32 0, %v462
        %v464 = vrot.slane %v460, %v463
        %vm465 = vcmp.eq.s32.totalorder %v464, %v251
        %vm466 = vcmp.eq.s32.totalorder %v464, %v252
        %vm467 = vcmp.eq.s32.totalorder %v464, %v253
        %vm468 = vcmp.eq.s32.totalorder %v464, %v254
        %vm469 = vcmp.eq.s32.totalorder %v464, %v255
        %vm470 = vcmp.eq.s32.totalorder %v464, %v256
        %vm471 = vcmp.eq.s32.totalorder %v464, %v257
        %vm472 = vcmp.eq.s32.totalorder %v464, %v258
        %vm473 = vcmp.eq.s32.totalorder %v464, %v259
        %vm474 = vcmp.eq.s32.totalorder %v464, %v260
        %vm475 = vcmp.eq.s32.totalorder %v464, %v261
        %vm476 = vcmp.eq.s32.totalorder %v464, %v262
        %vm477 = vcmp.eq.s32.totalorder %v464, %v263
        %vm478 = vcmp.eq.s32.totalorder %v464, %v264
        %vm479 = vcmp.eq.s32.totalorder %v464, %v265
        %vm480 = vcmp.eq.s32.totalorder %v464, %v266
        %482 = vset.pattern.permute.xlu0 1
        %483 = vperm.xlu0 %482, %v444
        %v484 = vpop.permute.xlu0 %483
        %487 = vset.pattern.permute.xlu0 1
        %488 = vperm.xlu0 %487, %v445
        %v489 = vpop.permute.xlu0 %488
        %492 = vset.pattern.permute.xlu0 1
        %493 = vperm.xlu0 %492, %v446
        %v494 = vpop.permute.xlu0 %493
        %497 = vset.pattern.permute.xlu0 1
        %498 = vperm.xlu0 %497, %v447
        %v499 = vpop.permute.xlu0 %498
        %502 = vset.pattern.permute.xlu0 1
        %503 = vperm.xlu0 %502, %v448
        %v504 = vpop.permute.xlu0 %503
        %507 = vset.pattern.permute.xlu0 1
        %508 = vperm.xlu0 %507, %v449
        %v509 = vpop.permute.xlu0 %508
        %512 = vset.pattern.permute.xlu0 1
        %513 = vperm.xlu0 %512, %v450
        %v514 = vpop.permute.xlu0 %513
        %517 = vset.pattern.permute.xlu0 1
        %518 = vperm.xlu0 %517, %v451
        %v519 = vpop.permute.xlu0 %518
        %522 = vset.pattern.permute.xlu0 1
        %523 = vperm.xlu0 %522, %v452
        %v524 = vpop.permute.xlu0 %523
        %527 = vset.pattern.permute.xlu0 1
        %528 = vperm.xlu0 %527, %v453
        %v529 = vpop.permute.xlu0 %528
        %532 = vset.pattern.permute.xlu0 1
        %533 = vperm.xlu0 %532, %v454
        %v534 = vpop.permute.xlu0 %533
        %537 = vset.pattern.permute.xlu0 1
        %538 = vperm.xlu0 %537, %v455
        %v539 = vpop.permute.xlu0 %538
        %542 = vset.pattern.permute.xlu0 1
        %543 = vperm.xlu0 %542, %v456
        %v544 = vpop.permute.xlu0 %543
        %547 = vset.pattern.permute.xlu0 1
        %548 = vperm.xlu0 %547, %v457
        %v549 = vpop.permute.xlu0 %548
        %552 = vset.pattern.permute.xlu0 1
        %553 = vperm.xlu0 %552, %v458
        %v554 = vpop.permute.xlu0 %553
        %557 = vset.pattern.permute.xlu0 1
        %558 = vperm.xlu0 %557, %v459
        %v559 = vpop.permute.xlu0 %558
        %v561 = vsel %vm465, %v484, 0.0
        %v562 = vsel %vm466, %v489, 0.0
        %v563 = vsel %vm467, %v494, 0.0
        %v564 = vsel %vm468, %v499, 0.0
        %v565 = vsel %vm469, %v504, 0.0
        %v566 = vsel %vm470, %v509, 0.0
        %v567 = vsel %vm471, %v514, 0.0
        %v568 = vsel %vm472, %v519, 0.0
        %v569 = vsel %vm473, %v524, 0.0
        %v570 = vsel %vm474, %v529, 0.0
        %v571 = vsel %vm475, %v534, 0.0
        %v572 = vsel %vm476, %v539, 0.0
        %v573 = vsel %vm477, %v544, 0.0
        %v574 = vsel %vm478, %v549, 0.0
        %v575 = vsel %vm479, %v554, 0.0
        %v576 = vsel %vm480, %v559, 0.0
        %v577 = vadd.f32 %v561, %v562
        %v578 = vadd.f32 %v577, %v563
        %v579 = vadd.f32 %v578, %v564
        %v580 = vadd.f32 %v579, %v565
        %v581 = vadd.f32 %v580, %v566
        %v582 = vadd.f32 %v581, %v567
        %v583 = vadd.f32 %v582, %v568
        %v584 = vadd.f32 %v583, %v569
        %v585 = vadd.f32 %v584, %v570
        %v586 = vadd.f32 %v585, %v571
        %v587 = vadd.f32 %v586, %v572
        %v588 = vadd.f32 %v587, %v573
        %v589 = vadd.f32 %v588, %v574
        %v590 = vadd.f32 %v589, %v575
        %v591 = vadd.f32 %v590, %v576
        %v592 = vrot.slane %v591, 4
        %v593 = vadd.f32 %v591, %v592
        %v594 = vrot.slane %v593, 2
        %v595 = vadd.f32 %v593, %v594
        %v596 = vrot.slane %v595, 1
        %v597 = vadd.f32 %v595, %v596
        %v598 = vadd.f32 %v441, %v597
        %s599 = sld [smem:[#allocation3 + $0x2]]
        %v600 = vstv %s599
        %v601 = vmul.f32 %v269, %v600
        %v602 = vmul.f32 %v270, %v600
        %v603 = vmul.f32 %v271, %v600
        %v604 = vmul.f32 %v272, %v600
        %v605 = vmul.f32 %v273, %v600
        %v606 = vmul.f32 %v274, %v600
        %v607 = vmul.f32 %v275, %v600
        %v608 = vmul.f32 %v276, %v600
        %v609 = vmul.f32 %v277, %v600
        %v610 = vmul.f32 %v278, %v600
        %v611 = vmul.f32 %v279, %v600
        %v612 = vmul.f32 %v280, %v600
        %v613 = vmul.f32 %v281, %v600
        %v614 = vmul.f32 %v282, %v600
        %v615 = vmul.f32 %v283, %v600
        %v616 = vmul.f32 %v284, %v600
        %v617 = vld [vmem:[%s242 + $0x2] sm:$0x1]
        %v618 = vlaneseq
        %v619 = vshrl.u32 %v618, 7
        %v620 = vsub.s32 0, %v619
        %v621 = vrot.slane %v617, %v620
        %vm622 = vcmp.eq.s32.totalorder %v621, %v251
        %vm623 = vcmp.eq.s32.totalorder %v621, %v252
        %vm624 = vcmp.eq.s32.totalorder %v621, %v253
        %vm625 = vcmp.eq.s32.totalorder %v621, %v254
        %vm626 = vcmp.eq.s32.totalorder %v621, %v255
        %vm627 = vcmp.eq.s32.totalorder %v621, %v256
        %vm628 = vcmp.eq.s32.totalorder %v621, %v257
        %vm629 = vcmp.eq.s32.totalorder %v621, %v258
        %vm630 = vcmp.eq.s32.totalorder %v621, %v259
        %vm631 = vcmp.eq.s32.totalorder %v621, %v260
        %vm632 = vcmp.eq.s32.totalorder %v621, %v261
        %vm633 = vcmp.eq.s32.totalorder %v621, %v262
        %vm634 = vcmp.eq.s32.totalorder %v621, %v263
        %vm635 = vcmp.eq.s32.totalorder %v621, %v264
        %vm636 = vcmp.eq.s32.totalorder %v621, %v265
        %vm637 = vcmp.eq.s32.totalorder %v621, %v266
        %639 = vset.pattern.permute.xlu0 2
        %640 = vperm.xlu0 %639, %v601
        %v641 = vpop.permute.xlu0 %640
        %644 = vset.pattern.permute.xlu0 2
        %645 = vperm.xlu0 %644, %v602
        %v646 = vpop.permute.xlu0 %645
        %649 = vset.pattern.permute.xlu0 2
        %650 = vperm.xlu0 %649, %v603
        %v651 = vpop.permute.xlu0 %650
        %654 = vset.pattern.permute.xlu0 2
        %655 = vperm.xlu0 %654, %v604
        %v656 = vpop.permute.xlu0 %655
        %659 = vset.pattern.permute.xlu0 2
        %660 = vperm.xlu0 %659, %v605
        %v661 = vpop.permute.xlu0 %660
        %664 = vset.pattern.permute.xlu0 2
        %665 = vperm.xlu0 %664, %v606
        %v666 = vpop.permute.xlu0 %665
        %669 = vset.pattern.permute.xlu0 2
        %670 = vperm.xlu0 %669, %v607
        %v671 = vpop.permute.xlu0 %670
        %674 = vset.pattern.permute.xlu0 2
        %675 = vperm.xlu0 %674, %v608
        %v676 = vpop.permute.xlu0 %675
        %679 = vset.pattern.permute.xlu0 2
        %680 = vperm.xlu0 %679, %v609
        %v681 = vpop.permute.xlu0 %680
        %684 = vset.pattern.permute.xlu0 2
        %685 = vperm.xlu0 %684, %v610
        %v686 = vpop.permute.xlu0 %685
        %689 = vset.pattern.permute.xlu0 2
        %690 = vperm.xlu0 %689, %v611
        %v691 = vpop.permute.xlu0 %690
        %694 = vset.pattern.permute.xlu0 2
        %695 = vperm.xlu0 %694, %v612
        %v696 = vpop.permute.xlu0 %695
        %699 = vset.pattern.permute.xlu0 2
        %700 = vperm.xlu0 %699, %v613
        %v701 = vpop.permute.xlu0 %700
        %704 = vset.pattern.permute.xlu0 2
        %705 = vperm.xlu0 %704, %v614
        %v706 = vpop.permute.xlu0 %705
        %709 = vset.pattern.permute.xlu0 2
        %710 = vperm.xlu0 %709, %v615
        %v711 = vpop.permute.xlu0 %710
        %714 = vset.pattern.permute.xlu0 2
        %715 = vperm.xlu0 %714, %v616
        %v716 = vpop.permute.xlu0 %715
        %v718 = vsel %vm622, %v641, 0.0
        %v719 = vsel %vm623, %v646, 0.0
        %v720 = vsel %vm624, %v651, 0.0
        %v721 = vsel %vm625, %v656, 0.0
        %v722 = vsel %vm626, %v661, 0.0
        %v723 = vsel %vm627, %v666, 0.0
        %v724 = vsel %vm628, %v671, 0.0
        %v725 = vsel %vm629, %v676, 0.0
        %v726 = vsel %vm630, %v681, 0.0
        %v727 = vsel %vm631, %v686, 0.0
        %v728 = vsel %vm632, %v691, 0.0
        %v729 = vsel %vm633, %v696, 0.0
        %v730 = vsel %vm634, %v701, 0.0
        %v731 = vsel %vm635, %v706, 0.0
        %v732 = vsel %vm636, %v711, 0.0
        %v733 = vsel %vm637, %v716, 0.0
        %v734 = vadd.f32 %v718, %v719
        %v735 = vadd.f32 %v734, %v720
        %v736 = vadd.f32 %v735, %v721
        %v737 = vadd.f32 %v736, %v722
        %v738 = vadd.f32 %v737, %v723
        %v739 = vadd.f32 %v738, %v724
        %v740 = vadd.f32 %v739, %v725
        %v741 = vadd.f32 %v740, %v726
        %v742 = vadd.f32 %v741, %v727
        %v743 = vadd.f32 %v742, %v728
        %v744 = vadd.f32 %v743, %v729
        %v745 = vadd.f32 %v744, %v730
        %v746 = vadd.f32 %v745, %v731
        %v747 = vadd.f32 %v746, %v732
        %v748 = vadd.f32 %v747, %v733
        %v749 = vrot.slane %v748, 4
        %v750 = vadd.f32 %v748, %v749
        %v751 = vrot.slane %v750, 2
        %v752 = vadd.f32 %v750, %v751
        %v753 = vrot.slane %v752, 1
        %v754 = vadd.f32 %v752, %v753
        %v755 = vadd.f32 %v598, %v754
        %s756 = sld [smem:[#allocation3 + $0x3]]
        %v757 = vstv %s756
        %v758 = vmul.f32 %v269, %v757
        %v759 = vmul.f32 %v270, %v757
        %v760 = vmul.f32 %v271, %v757
        %v761 = vmul.f32 %v272, %v757
        %v762 = vmul.f32 %v273, %v757
        %v763 = vmul.f32 %v274, %v757
        %v764 = vmul.f32 %v275, %v757
        %v765 = vmul.f32 %v276, %v757
        %v766 = vmul.f32 %v277, %v757
        %v767 = vmul.f32 %v278, %v757
        %v768 = vmul.f32 %v279, %v757
        %v769 = vmul.f32 %v280, %v757
        %v770 = vmul.f32 %v281, %v757
        %v771 = vmul.f32 %v282, %v757
        %v772 = vmul.f32 %v283, %v757
        %v773 = vmul.f32 %v284, %v757
        %v774 = vld [vmem:[%s242 + $0x3] sm:$0x1]
        %v775 = vlaneseq
        %v776 = vshrl.u32 %v775, 7
        %v777 = vsub.s32 0, %v776
        %v778 = vrot.slane %v774, %v777
        %vm779 = vcmp.eq.s32.totalorder %v778, %v251
        %vm780 = vcmp.eq.s32.totalorder %v778, %v252
        %vm781 = vcmp.eq.s32.totalorder %v778, %v253
        %vm782 = vcmp.eq.s32.totalorder %v778, %v254
        %vm783 = vcmp.eq.s32.totalorder %v778, %v255
        %vm784 = vcmp.eq.s32.totalorder %v778, %v256
        %vm785 = vcmp.eq.s32.totalorder %v778, %v257
        %vm786 = vcmp.eq.s32.totalorder %v778, %v258
        %vm787 = vcmp.eq.s32.totalorder %v778, %v259
        %vm788 = vcmp.eq.s32.totalorder %v778, %v260
        %vm789 = vcmp.eq.s32.totalorder %v778, %v261
        %vm790 = vcmp.eq.s32.totalorder %v778, %v262
        %vm791 = vcmp.eq.s32.totalorder %v778, %v263
        %vm792 = vcmp.eq.s32.totalorder %v778, %v264
        %vm793 = vcmp.eq.s32.totalorder %v778, %v265
        %vm794 = vcmp.eq.s32.totalorder %v778, %v266
        %796 = vset.pattern.permute.xlu0 3
        %797 = vperm.xlu0 %796, %v758
        %v798 = vpop.permute.xlu0 %797
        %801 = vset.pattern.permute.xlu0 3
        %802 = vperm.xlu0 %801, %v759
        %v803 = vpop.permute.xlu0 %802
        %806 = vset.pattern.permute.xlu0 3
        %807 = vperm.xlu0 %806, %v760
        %v808 = vpop.permute.xlu0 %807
        %811 = vset.pattern.permute.xlu0 3
        %812 = vperm.xlu0 %811, %v761
        %v813 = vpop.permute.xlu0 %812
        %816 = vset.pattern.permute.xlu0 3
        %817 = vperm.xlu0 %816, %v762
        %v818 = vpop.permute.xlu0 %817
        %821 = vset.pattern.permute.xlu0 3
        %822 = vperm.xlu0 %821, %v763
        %v823 = vpop.permute.xlu0 %822
        %826 = vset.pattern.permute.xlu0 3
        %827 = vperm.xlu0 %826, %v764
        %v828 = vpop.permute.xlu0 %827
        %831 = vset.pattern.permute.xlu0 3
        %832 = vperm.xlu0 %831, %v765
        %v833 = vpop.permute.xlu0 %832
        %836 = vset.pattern.permute.xlu0 3
        %837 = vperm.xlu0 %836, %v766
        %v838 = vpop.permute.xlu0 %837
        %841 = vset.pattern.permute.xlu0 3
        %842 = vperm.xlu0 %841, %v767
        %v843 = vpop.permute.xlu0 %842
        %846 = vset.pattern.permute.xlu0 3
        %847 = vperm.xlu0 %846, %v768
        %v848 = vpop.permute.xlu0 %847
        %851 = vset.pattern.permute.xlu0 3
        %852 = vperm.xlu0 %851, %v769
        %v853 = vpop.permute.xlu0 %852
        %856 = vset.pattern.permute.xlu0 3
        %857 = vperm.xlu0 %856, %v770
        %v858 = vpop.permute.xlu0 %857
        %861 = vset.pattern.permute.xlu0 3
        %862 = vperm.xlu0 %861, %v771
        %v863 = vpop.permute.xlu0 %862
        %866 = vset.pattern.permute.xlu0 3
        %867 = vperm.xlu0 %866, %v772
        %v868 = vpop.permute.xlu0 %867
        %871 = vset.pattern.permute.xlu0 3
        %872 = vperm.xlu0 %871, %v773
        %v873 = vpop.permute.xlu0 %872
        %v875 = vsel %vm779, %v798, 0.0
        %v876 = vsel %vm780, %v803, 0.0
        %v877 = vsel %vm781, %v808, 0.0
        %v878 = vsel %vm782, %v813, 0.0
        %v879 = vsel %vm783, %v818, 0.0
        %v880 = vsel %vm784, %v823, 0.0
        %v881 = vsel %vm785, %v828, 0.0
        %v882 = vsel %vm786, %v833, 0.0
        %v883 = vsel %vm787, %v838, 0.0
        %v884 = vsel %vm788, %v843, 0.0
        %v885 = vsel %vm789, %v848, 0.0
        %v886 = vsel %vm790, %v853, 0.0
        %v887 = vsel %vm791, %v858, 0.0
        %v888 = vsel %vm792, %v863, 0.0
        %v889 = vsel %vm793, %v868, 0.0
        %v890 = vsel %vm794, %v873, 0.0
        %v891 = vadd.f32 %v875, %v876
        %v892 = vadd.f32 %v891, %v877
        %v893 = vadd.f32 %v892, %v878
        %v894 = vadd.f32 %v893, %v879
        %v895 = vadd.f32 %v894, %v880
        %v896 = vadd.f32 %v895, %v881
        %v897 = vadd.f32 %v896, %v882
        %v898 = vadd.f32 %v897, %v883
        %v899 = vadd.f32 %v898, %v884
        %v900 = vadd.f32 %v899, %v885
        %v901 = vadd.f32 %v900, %v886
        %v902 = vadd.f32 %v901, %v887
        %v903 = vadd.f32 %v902, %v888
        %v904 = vadd.f32 %v903, %v889
        %v905 = vadd.f32 %v904, %v890
        %v906 = vrot.slane %v905, 4
        %v907 = vadd.f32 %v905, %v906
        %v908 = vrot.slane %v907, 2
        %v909 = vadd.f32 %v907, %v908
        %v910 = vrot.slane %v909, 1
        %v911 = vadd.f32 %v909, %v910
        %v912 = vadd.f32 %v755, %v911
        %v913 = vld [vmem:[%s246] sm:$0x1]
        %s914 = sld [smem:[#allocation3 + $0x4]]
        %v915 = vstv %s914
        %v916 = vmul.f32 %v913, %v915
        %v917 = vadd.f32 %v912, %v916
        %v918 = vld [vmem:[%s246 + $0x1] sm:$0x1]
        %s919 = sld [smem:[#allocation3 + $0x5]]
        %v920 = vstv %s919
        %v921 = vmul.f32 %v918, %v920
        %v922 = vadd.f32 %v917, %v921
        %v923 = vld [vmem:[%s246 + $0x2] sm:$0x1]
        %s924 = sld [smem:[#allocation3 + $0x6]]
        %v925 = vstv %s924
        %v926 = vmul.f32 %v923, %v925
        %v927 = vadd.f32 %v922, %v926
        %928 = vst [vmem:[%s249] sm:$0x1] %v927
        %p929 = scmp.lt.s32.totalorder %s18, 1
        %s930 = scalar_select %p929, %s18, 1
        %s931 = scalar_lea.vmem %s5, %s930
        // Predicated region
        $region45: #{lr_layer_forward.1} parent=39 // pred_check
          %p932 = pneg %p151
        $region46: #{lr_layer_forward.1} parent=39 // pred_check_branch
          %934 = sbr.rel (%p932) target = $region48
        $region47: #{lr_layer_forward.1} parent=39 // pred_region
          _
        $region48: #{lr_layer_forward.1} parent=39 // pred_fallthru
          _
      $region40: #{lr_layer_forward.1} parent=5 // pred_fallthru
        _
      %p935 = scmp.le.s32.totalorder 2, %s13
      // Predicated region
      $region49: #{lr_layer_forward.1} parent=5 // pred_check
        %p936 = pneg %p935
      $region50: #{lr_layer_forward.1} parent=5 // pred_check_branch
        %938 = sbr.rel (%p936) target = $region52
      $region51: #{lr_layer_forward.1} parent=5 // pred_region
        %s939 = ssub.s32 %s13, 2
        // Predicated region
        $region53: #{lr_layer_forward.1} parent=51 // pred_check
          %p940 = pneg %p157
        $region54: #{lr_layer_forward.1} parent=51 // pred_check_branch
          %942 = sbr.rel (%p940) target = $region56
        $region55: #{lr_layer_forward.1} parent=51 // pred_region
          %p943 = scmp.lt.s32.totalorder %s19, 1
          %s944 = scalar_select %p943, %s19, 1
          %s945 = scalar_lea.vmem %s5, %s944
        $region56: #{lr_layer_forward.1} parent=51 // pred_fallthru
          _
      $region52: #{lr_layer_forward.1} parent=5 // pred_fallthru
        _
    $region6: #{lr_layer_forward.1} parent=1 // loop_footer
      %s17 = sadd.s32 1, %s13
    $region7: #{lr_layer_forward.1} parent=1 // loop_footer_branch
      %12 = sbr.rel target = $region3
    $region8: #{lr_layer_forward.1} parent=1 // loop_exit
      _
    %946 = vsyncpa [#allocation4], 1
    %s947 = scalar_lea.sflag [#allocation4], 1
    %948 = vsyncpa %s947, 1

</llo_original>
